<compile_context>
chip_gen: v7x
topology: tpu7x:2x2x1
jax: 0.10.0
libtpu: 0.0.40
codegen_flags: <defaults>
</compile_context>

<pallas_src>
import functools

import jax
import jax.numpy as jnp
from jax import lax
from jax.experimental import pallas as pl
from jax.experimental.pallas import tpu as pltpu


# -----------------------------------------------------------------------------
# glue: reshape_state (mirrors the PyTorch helper; pure layout work)
# -----------------------------------------------------------------------------
def reshape_state(state):
    h_state, c_state = state
    new_h = jnp.concatenate([h_state[:-1], h_state[1:]], axis=2)
    new_c = jnp.concatenate([c_state[:-1], c_state[1:]], axis=2)
    return new_h, new_c


# -----------------------------------------------------------------------------
# Pallas kernel A: hoisted, fused input projection  X4 = x2d @ W_ih4 + b4
# bf16 MXU operands, f32 accumulation, bf16 output. Tiled over M and 4H.
# -----------------------------------------------------------------------------
def _input_projection_kernel(x_ref, w_ref, b_ref, o_ref):
    acc = jnp.dot(x_ref[...], w_ref[...], preferred_element_type=jnp.float32)
    o_ref[...] = (acc + b_ref[...]).astype(o_ref.dtype)


def input_projection_pallas(x2d_bf16, w_ih4_bf16, b4_f32, *, block_m=256, block_n=512):
    M, H = x2d_bf16.shape
    H4 = w_ih4_bf16.shape[1]
    bm = M if M <= block_m else block_m            # block_m multiple of 8; partial last
    bn = H4 if H4 <= block_n else block_n          # block handled by Pallas masking
    grid = (pl.cdiv(M, bm), pl.cdiv(H4, bn))

    footprint = (bm * H * 2 * 2) + (H * bn * 2 * 2) + (bn * 4 * 2) + (bm * bn * 2 * 2)
    vmem_limit = int(min(96 * 2**20, max(32 * 2**20, footprint * 1.3)))

    return pl.pallas_call(
        _input_projection_kernel,
        out_shape=jax.ShapeDtypeStruct((M, H4), jnp.bfloat16),
        grid_spec=pltpu.PrefetchScalarGridSpec(
            num_scalar_prefetch=0,
            grid=grid,
            in_specs=[
                pl.BlockSpec((bm, H), lambda m, n: (m, 0)),
                pl.BlockSpec((H, bn), lambda m, n: (0, n)),
                pl.BlockSpec((1, bn), lambda m, n: (0, n)),
            ],
            out_specs=pl.BlockSpec((bm, bn), lambda m, n: (m, n)),
        ),
        compiler_params=pltpu.CompilerParams(
            dimension_semantics=("parallel", "parallel"),
            vmem_limit_bytes=vmem_limit,
        ),
    )(x2d_bf16, w_ih4_bf16, b4_f32)


# -----------------------------------------------------------------------------
# Pallas kernel B: LSTM recurrence over time chunks, h/c carried in VMEM scratch.
# Per timestep: pre = X4[:, t, :] + h_bf16 @ W_hh4_bf16 (f32 acc) -> gates -> h, c.
# -----------------------------------------------------------------------------
def _lstm_recurrence_kernel(x4_ref, h0_ref, c0_ref, whh_ref,
                            out_ref, hT_ref, cT_ref,
                            h_sc, c_sc, *, steps, hidden, unroll):
    H = hidden
    chunk = pl.program_id(0)

    @pl.when(chunk == 0)
    def _():
        h_sc[...] = h0_ref[...]
        c_sc[...] = c0_ref[...]

    def step(t, carry):
        h, c = carry
        # per-step slice read from the VMEM ref (no whole-chunk hoist into vregs)
        x4_t = jnp.squeeze(x4_ref[:, pl.ds(t, 1), :], axis=1).astype(jnp.float32)
        pre = x4_t + jnp.dot(h.astype(jnp.bfloat16), whh_ref[...],
                             preferred_element_type=jnp.float32)
        # sigmoid(x) = 0.5*tanh(0.5*x) + 0.5  -> one EUP op per gate (5 tanh per step total)
        i_g = 0.5 * jnp.tanh(0.5 * pre[:, 0 * H:1 * H]) + 0.5
        f_g = 0.5 * jnp.tanh(0.5 * pre[:, 1 * H:2 * H]) + 0.5
        g_g = jnp.tanh(pre[:, 2 * H:3 * H])
        o_g = 0.5 * jnp.tanh(0.5 * pre[:, 3 * H:4 * H]) + 0.5
        c = f_g * c + i_g * g_g
        h = o_g * jnp.tanh(c)
        out_ref[:, pl.ds(t, 1), :] = h[:, None, :]
        return (h, c)

    h, c = lax.fori_loop(0, steps, step, (h_sc[...], c_sc[...]), unroll=unroll)

    # carry across chunks
    h_sc[...] = h
    c_sc[...] = c

    # final state written only once, on the last grid step
    @pl.when(chunk == pl.num_programs(0) - 1)
    def _():
        hT_ref[...] = h
        cT_ref[...] = c


def _choose_time_chunk(B, Tm1, H, vmem_budget_bytes):
    """Largest multiple-of-8 time chunk that divides Tm1 and fits the VMEM budget."""
    H4 = 4 * H
    fixed = H * H4 * 2 + 10 * B * H * 4          # bf16 W_hh (single-buffered) + small state
    per_t = B * (H4 * 2 * 2 + H * 4 * 2)         # bf16 X4 (x2 bufs) + f32 out (x2 bufs)
    tc_cap = max(8, (vmem_budget_bytes - fixed) // max(per_t, 1))
    if Tm1 <= tc_cap:
        return Tm1
    c = (tc_cap // 8) * 8
    while c >= 8:
        if Tm1 % c == 0:
            return c
        c -= 8
    # TODO(synk): Tm1 with no multiple-of-8 divisor <= budget falls back to a single chunk;
    # may exceed the budget for very long, awkward sequence lengths.
    return Tm1


def decoder_lstm_pallas(embedded, h0, c0, w_ih4, w_hh4, b4, *, vmem_budget=24 * 2**20):
    """embedded: (B, T, H) batch-major f32. Returns (outputs (B,T-1,H), hT (B,H), cT (B,H))."""
    B, T, H = embedded.shape
    Tm1 = T - 1
    H4 = 4 * H

    # --- hoisted fused input projection (one big GEMM, bias folded, bf16 out) ---
    x2d = embedded[:, :Tm1, :].reshape(B * Tm1, H).astype(jnp.bfloat16)
    w_ih4_bf = w_ih4.astype(jnp.bfloat16)
    x4 = input_projection_pallas(x2d, w_ih4_bf, b4).reshape(B, Tm1, H4)   # bf16

    w_hh4_bf = w_hh4.astype(jnp.bfloat16)

    # --- budget-driven time-chunk size for the recurrent kernel ---
    tc = _choose_time_chunk(B, Tm1, H, vmem_budget)
    num_chunks = Tm1 // tc
    unroll = max(1, min(tc, 8))

    x4_bytes = B * tc * H4 * 2 * 2
    out_bytes = B * tc * H * 4 * 2
    w_bytes = H * H4 * 2
    small = 10 * B * H * 4
    footprint = x4_bytes + out_bytes + w_bytes + small
    vmem_limit = int(min(96 * 2**20, max(32 * 2**20, footprint * 1.3)))

    kernel = functools.partial(_lstm_recurrence_kernel, steps=tc, hidden=H, unroll=unroll)
    grid_spec = pltpu.PrefetchScalarGridSpec(
        num_scalar_prefetch=0,
        grid=(num_chunks,),
        in_specs=[
            pl.BlockSpec((B, tc, H4), lambda c: (0, c, 0)),                        # X4 chunk
            pl.BlockSpec((B, H), lambda c: (0, 0), pipeline_mode=pl.Buffered(1)),  # h0 (invariant)
            pl.BlockSpec((B, H), lambda c: (0, 0), pipeline_mode=pl.Buffered(1)),  # c0 (invariant)
            pl.BlockSpec((H, H4), lambda c: (0, 0), pipeline_mode=pl.Buffered(1)), # W_hh (invariant)
        ],
        out_specs=[
            pl.BlockSpec((B, tc, H), lambda c: (0, c, 0)),    # per-step outputs
            pl.BlockSpec((B, H), lambda c: (0, 0)),           # final h
            pl.BlockSpec((B, H), lambda c: (0, 0)),           # final c
        ],
        scratch_shapes=[
            pltpu.VMEM((B, H), jnp.float32),                  # h carry
            pltpu.VMEM((B, H), jnp.float32),                  # c carry
        ],
    )
    out, hT, cT = pl.pallas_call(
        kernel,
        out_shape=(
            jax.ShapeDtypeStruct((B, Tm1, H), jnp.float32),
            jax.ShapeDtypeStruct((B, H), jnp.float32),
            jax.ShapeDtypeStruct((B, H), jnp.float32),
        ),
        grid_spec=grid_spec,
        compiler_params=pltpu.CompilerParams(
            dimension_semantics=("arbitrary",),               # sequential recurrence
            vmem_limit_bytes=vmem_limit,
        ),
    )(x4, h0, c0, w_hh4_bf)
    return out, hT, cT


# -----------------------------------------------------------------------------
# Decoder forward (glue: embedding lookup + state reshape; compute in Pallas)
# -----------------------------------------------------------------------------
def decoder_forward(params, tgt, dec_state, encoder_outputs=None, src_lengths=None):
    h_state, c_state = dec_state
    if h_state.shape[0] == 2:
        h_state, c_state = reshape_state((h_state, c_state))

    # embedding (padding_idx row is zero in the table) + dropout (eval => identity)
    embedded = jnp.take(params["embedding"], tgt, axis=0)        # (B, T, H)

    out, hT, cT = decoder_lstm_pallas(
        embedded, h_state[0], c_state[0],
        params["w_ih4"], params["w_hh4"], params["b4"])

    dec_hidden = (hT[None, :, :], cT[None, :, :])                # ((1,B,H), (1,B,H))
    return out, dec_hidden


# -----------------------------------------------------------------------------
# pure-JAX f32 reference (lax.scan LSTM, same fused weight layout) for correctness
# -----------------------------------------------------------------------------
def decoder_forward_ref(params, tgt, dec_state):
    h_state, c_state = dec_state
    if h_state.shape[0] == 2:
        h_state, c_state = reshape_state((h_state, c_state))
    embedded = jnp.take(params["embedding"], tgt, axis=0)
    B, T, H = embedded.shape
    x_tm = jnp.transpose(embedded[:, : T - 1, :], (1, 0, 2))     # (T-1, B, H)
    w_ih4, w_hh4, b4 = params["w_ih4"], params["w_hh4"], params["b4"]

    def step(carry, x_t):
        h, c = carry
        pre = x_t @ w_ih4 + h @ w_hh4 + b4
        i_g = jax.nn.sigmoid(pre[:, 0 * H:1 * H])
        f_g = jax.nn.sigmoid(pre[:, 1 * H:2 * H])
        g_g = jnp.tanh(pre[:, 2 * H:3 * H])
        o_g = jax.nn.sigmoid(pre[:, 3 * H:4 * H])
        c = f_g * c + i_g * g_g
        h = o_g * jnp.tanh(c)
        return (h, c), h

    (hT, cT), ys = lax.scan(step, (h_state[0], c_state[0]), x_tm)
    return jnp.transpose(ys, (1, 0, 2)), (hT[None], cT[None])


# -----------------------------------------------------------------------------
# deterministic parameter init (shapes from Decoder.__init__, fused gate layout)
# -----------------------------------------------------------------------------
def init_params(key, vocab_size, hidden_size, padding_idx):
    k_emb, k_wih, k_whh, k_b = jax.random.split(key, 4)
    scale = 1.0 / jnp.sqrt(hidden_size)
    embedding = jax.random.normal(k_emb, (vocab_size, hidden_size), jnp.float32) * 0.1
    embedding = embedding.at[padding_idx].set(0.0)               # padding_idx row = 0
    # fused gate layout: gates (i, f, g, o) concatenated along output dim; bias folded
    w_ih4 = jax.random.uniform(k_wih, (hidden_size, 4 * hidden_size), jnp.float32,
                               -scale, scale)
    w_hh4 = jax.random.uniform(k_whh, (hidden_size, 4 * hidden_size), jnp.float32,
                               -scale, scale)
    b4 = jax.random.uniform(k_b, (1, 4 * hidden_size), jnp.float32, -scale, scale)
    return {"embedding": embedding, "w_ih4": w_ih4, "w_hh4": w_hh4, "b4": b4}


# -----------------------------------------------------------------------------
# main
# -----------------------------------------------------------------------------
if __name__ == "__main__":
    # NOTE: toy shapes mandated by the test harness; real workloads should pad B >= 8 and
    # use H that is a multiple of 128 for lane/sublane-dense blocks.
    B, T, H, V = 2, 8, 32, 20
    padding_idx = 0

    key = jax.random.PRNGKey(0)
    k_p, k_tgt, k_h, k_c = jax.random.split(key, 4)

    params = init_params(k_p, V, H, padding_idx)
    tgt = jax.random.randint(k_tgt, (B, T), 1, V, dtype=jnp.int32)   # (B, T) token ids
    h0 = jax.random.normal(k_h, (1, B, H), jnp.float32) * 0.1        # (num_layers, B, H)
    c0 = jax.random.normal(k_c, (1, B, H), jnp.float32) * 0.1

    outputs, (hT, cT) = decoder_forward(params, tgt, (h0, c0))
    outputs = jax.block_until_ready(outputs)
    hT = jax.block_until_ready(hT)
    cT = jax.block_until_ready(cT)

    ref_out, (ref_h, ref_c) = decoder_forward_ref(params, tgt, (h0, c0))

    assert outputs.shape == (B, T - 1, H)
    assert hT.shape == (1, B, H) and cT.shape == (1, B, H)
    # tolerance loosened vs the f32 reference: bf16 MXU operands (f32 accumulation)
    assert jnp.allclose(outputs, ref_out, atol=2e-2, rtol=2e-2)
    assert jnp.allclose(hT, ref_h, atol=2e-2, rtol=2e-2)
    assert jnp.allclose(cT, ref_c, atol=2e-2, rtol=2e-2)

    print("KERNEL_OK")
</pallas_src>

<mosaic_0001>
module attributes {stable_mosaic.version = 11 : i64} {
  func.func @_input_projection_kernel(%arg0: i32, %arg1: i32, %arg2: memref<14x32xbf16, #tpu.memory_space<vmem>>, %arg3: memref<32x128xbf16, #tpu.memory_space<vmem>>, %arg4: memref<1x128xf32, #tpu.memory_space<vmem>>, %arg5: memref<14x128xbf16, #tpu.memory_space<vmem>>) attributes {dimension_semantics = [#tpu.dimension_semantics<parallel>, #tpu.dimension_semantics<parallel>], iteration_bounds = array<i64: 1, 1>, scalar_prefetch = 0 : i64, scratch_operands = 0 : i64, tpu.core_type = #tpu.core_type<tc>, window_params = [{transform_indices = @transform_0, window_bounds = array<i64: 14, 32>}, {transform_indices = @transform_1, window_bounds = array<i64: 32, 128>}, {transform_indices = @transform_2, window_bounds = array<i64: 1, 128>}, {transform_indices = @transform_3, window_bounds = array<i64: 14, 128>}]} {
    %c0 = arith.constant 0 : index
    %c0_0 = arith.constant 0 : index
    %0 = vector.load %arg2[%c0, %c0_0] : memref<14x32xbf16, #tpu.memory_space<vmem>>, vector<14x32xbf16>
    %c0_1 = arith.constant 0 : index
    %c0_2 = arith.constant 0 : index
    %1 = vector.load %arg3[%c0_1, %c0_2] : memref<32x128xbf16, #tpu.memory_space<vmem>>, vector<32x128xbf16>
    %cst = arith.constant dense<0.000000e+00> : vector<14x128xf32>
    %2 = tpu.matmul %0, %1, %cst {dimension_numbers = #tpu.dot_dimension_numbers<[1], [0], [0], [1], [0, 0, 1, 1], [], []>} : vector<14x32xbf16>, vector<32x128xbf16>, vector<14x128xf32> -> vector<14x128xf32>
    %c0_3 = arith.constant 0 : index
    %c0_4 = arith.constant 0 : index
    %3 = vector.load %arg4[%c0_3, %c0_4] : memref<1x128xf32, #tpu.memory_space<vmem>>, vector<1x128xf32>
    %4 = vector.broadcast %3 : vector<1x128xf32> to vector<14x128xf32>
    %5 = arith.addf %2, %4 : vector<14x128xf32>
    %6 = arith.truncf %5 : vector<14x128xf32> to vector<14x128xbf16>
    %c0_5 = arith.constant 0 : index
    %c0_6 = arith.constant 0 : index
    %7 = vector.load %arg5[%c0_5, %c0_6] : memref<14x128xbf16, #tpu.memory_space<vmem>>, vector<14x128xbf16>
    tpu.vector_store %arg5[%c0_5, %c0_6], %6 {strides = array<i32>} : memref<14x128xbf16, #tpu.memory_space<vmem>>, vector<14x128xbf16>,
    return
  }
  func.func @transform_0(%arg0: i32, %arg1: i32) -> (i32, i32) {
    %c0_i32 = arith.constant 0 : i32
    %c0_i32_0 = arith.constant 0 : i32
    return %arg0, %c0_i32 : i32, i32
  }
  func.func @transform_1(%arg0: i32, %arg1: i32) -> (i32, i32) {
    %c0_i32 = arith.constant 0 : i32
    %c0_i32_0 = arith.constant 0 : i32
    return %c0_i32, %arg1 : i32, i32
  }
  func.func @transform_2(%arg0: i32, %arg1: i32) -> (i32, i32) {
    %c0_i32 = arith.constant 0 : i32
    %c0_i32_0 = arith.constant 0 : i32
    return %c0_i32, %arg1 : i32, i32
  }
  func.func @transform_3(%arg0: i32, %arg1: i32) -> (i32, i32) {
    %c0_i32 = arith.constant 0 : i32
    return %arg0, %arg1 : i32, i32
  }
}

</mosaic_0001>

<llo_original>
// kernel: tpu_custom_call.1
$region0: #{tpu_custom_call.1}
  #allocation0 [shape = 'u32[]', space=smem, size = 0x4, offset = 0x4, fixed_abs, tag = 'smem constant byte address 0x4 - core index']
  #allocation1 [shape = 'u32[144,128]{1,0:T(1,128)}', space=vmem, size = 0x12000, scoped, tag = 'internal scratch']
  %s0 = inlined_call_operand.hbm [shape: bf16[14,32], index: 0, kind: input, shape index: {}]
  %s1 = inlined_call_operand.hbm [shape: bf16[32,128], index: 1, kind: input, shape index: {}]
  %s2 = inlined_call_operand.vmem [shape: f32[1,128], index: 2, kind: input, shape index: {}]
  %s3 = inlined_call_operand.hbm [shape: bf16[14,128], index: 3, kind: output, shape index: {}]
  %s4 = sld [smem:[#allocation0]]
  $region30: #{tpu_custom_call.1} parent=0
    _
  %s6 = ssub.s32 1, %s4
  %s7 = scalar_select 0, %s6, %s4
  $region1: #{tpu_custom_call.1} parent=0
    #allocation2 [shape = 'u8[4096]{0}', space=vmem, size = 0x1000, scoped, tag = 'input window, operand 0, single buffered']
    #allocation3 [shape = 's32[1]{0}', space=sflag, size = 0x4, scoped, tag = 'scoped memory for tpu_custom_call.1']
    #allocation4 [shape = 's32[1]{0}', space=sflag, size = 0x4, scoped, tag = 'scoped memory for tpu_custom_call.1']
    #allocation5 [shape = 'u8[8192]{0}', space=vmem, size = 0x2000, scoped, tag = 'input window, operand 1, single buffered']
    #allocation6 [shape = 's32[1]{0}', space=sflag, size = 0x4, scoped, tag = 'scoped memory for tpu_custom_call.1']
    #allocation7 [shape = 'u8[4096]{0}', space=vmem, size = 0x1000, scoped, tag = 'output window, operand 0, single buffered']
    %8 = vsyncpa [#allocation3], 0
    %9 = vsyncpa [#allocation6], 0
    %10 = vsyncpa [#allocation4], 0
    // Predicated region
    $region2: #{tpu_custom_call.1} parent=1 // pred_check
      _
    $region3: #{tpu_custom_call.1} parent=1 // pred_check_branch
      %12 = sbr.rel (0) target = $region5
    $region4: #{tpu_custom_call.1} parent=1 // pred_region
      %s14 = ssub.s32 128, 128
      %15 = vsyncadd [#allocation3], %s14
      %s16 = sshll.u32 [#allocation2], 4
      %s17 = int_to_ptr.vmem [resolvable:$true] %s16
      %22 = dma.hbm_to_vmem [thread:$0]  %s0, 128, %s17, [#allocation3], 64, 64, 4
    $region5: #{tpu_custom_call.1} parent=1 // pred_fallthru
      _
    // Predicated region
    $region6: #{tpu_custom_call.1} parent=1 // pred_check
      _
    $region7: #{tpu_custom_call.1} parent=1 // pred_check_branch
      %24 = sbr.rel (0) target = $region9
    $region8: #{tpu_custom_call.1} parent=1 // pred_region
      %s26 = ssub.s32 256, 256
      %27 = vsyncadd [#allocation6], %s26
      %s28 = sshll.u32 [#allocation5], 4
      %s29 = int_to_ptr.vmem [resolvable:$true] %s28
      %34 = dma.hbm_to_vmem [thread:$0]  %s1, 256, %s29, [#allocation6], 64, 64, 4
    $region9: #{tpu_custom_call.1} parent=1 // pred_fallthru
      _
    // Predicated region
    $region10: #{tpu_custom_call.1} parent=1 // pred_check
      _
    $region11: #{tpu_custom_call.1} parent=1 // pred_check_branch
      %36 = sbr.rel (0) target = $region13
    $region12: #{tpu_custom_call.1} parent=1 // pred_region
      _
    $region13: #{tpu_custom_call.1} parent=1 // pred_fallthru
      _
    // Predicated region
    $region14: #{tpu_custom_call.1} parent=1 // pred_check
      _
    $region15: #{tpu_custom_call.1} parent=1 // pred_check_branch
      %38 = sbr.rel (0) target = $region17
    $region16: #{tpu_custom_call.1} parent=1 // pred_region
      %39 = dma.done [#allocation3], 128
    $region17: #{tpu_custom_call.1} parent=1 // pred_fallthru
      _
    // Predicated region
    $region18: #{tpu_custom_call.1} parent=1 // pred_check
      _
    $region19: #{tpu_custom_call.1} parent=1 // pred_check_branch
      %41 = sbr.rel (0) target = $region21
    $region20: #{tpu_custom_call.1} parent=1 // pred_region
      %42 = dma.done [#allocation6], 256
    $region21: #{tpu_custom_call.1} parent=1 // pred_fallthru
      _
    %v44 = vld [vmem:[#allocation2] sm:$0xf]
    %v45 = vld [vmem:[#allocation2 + $0x4] sm:$0x7]
    %v46 = vld [vmem:[#allocation5] sm:$0xf]
    %v47 = vld [vmem:[#allocation5 + $0x4] sm:$0xf]
    %v48 = vld [vmem:[#allocation5 + $0x8] sm:$0xf]
    %v49 = vld [vmem:[#allocation5 + $0xc] sm:$0xf]
    %v50 = vld [vmem:[%s2] sm:$0x1]
    %v52 = vlaneseq
    %v53 = vshrl.u32 %v52, 7
    %v54 = vsub.s32 0, %v53
    %v55 = vrot.slane %v50, %v54
    %v59 = vunpack.c.l.b16 %v44
    %v60 = vunpack.c.l.b16 %v45
    %v61 = vpack.c.b16 %v60, %v59
    %v66 = vunpack.c.l.b16 %v46
    %v67 = vunpack.c.l.b16 %v47
    %v68 = vunpack.c.l.b16 %v48
    %v69 = vunpack.c.l.b16 %v49
    %v70 = vpack.c.b16 %v67, %v66
    %v71 = vpack.c.b16 %v69, %v68
    %vm74 = vcmask 261120
    %v76 = vsel %vm74, %v61, 0
    %78 = vmatprep.subr.bf16.mxu0 0
    %79 = vmatpush1.bf16.msra.mxu0 %v70
    %80 = vmatprep.subr.bf16.mxu0 0
    %81 = vmatpush1.bf16.msra.mxu0 %v71
    %82 = vmatprep.subr.bf16.mxu0 0
    %83 = vmatpush1.bf16.msra.mxu0 0
    %84 = vmatprep.subr.bf16.mxu0 0
    %85 = vmatpush1.bf16.msra.mxu0 0
    %86 = vmatprep.subr.bf16.mxu0 0
    %87 = vmatpush1.bf16.msra.mxu0 0
    %88 = vmatprep.subr.bf16.mxu0 0
    %89 = vmatpush1.bf16.msra.mxu0 0
    %90 = vmatprep.subr.bf16.mxu0 0
    %91 = vmatpush1.bf16.msra.mxu0 0
    %92 = vmatprep.subr.bf16.mxu0 0
    %93 = vmatpush1.bf16.msra.mxu0 0
    %94 = vmatprep.subr.bf16.mxu0 0
    %95 = vmatpush1.bf16.msra.mxu0 0
    %96 = vmatprep.subr.bf16.mxu0 0
    %97 = vmatpush1.bf16.msra.mxu0 0
    %98 = vmatprep.subr.bf16.mxu0 0
    %99 = vmatpush1.bf16.msra.mxu0 0
    %100 = vmatprep.subr.bf16.mxu0 0
    %101 = vmatpush1.bf16.msra.mxu0 0
    %102 = vmatprep.subr.bf16.mxu0 0
    %103 = vmatpush1.bf16.msra.mxu0 0
    %104 = vmatprep.subr.bf16.mxu0 0
    %105 = vmatpush1.bf16.msra.mxu0 0
    %106 = vmatprep.subr.bf16.mxu0 0
    %107 = vmatpush1.bf16.msra.mxu0 0
    %108 = vmatprep.subr.bf16.mxu0 0
    %109 = vmatpush1.bf16.msra.mxu0 0
    %110 = vmatprep.mubr.bf16.mxu0 0
    %111 = vmatmul.mubr.bf16.gmra.mrb[0].mxu0 %v76
    %v112 = vpop.f32.mrb[0].mxu0
    %v113 = vadd.f32 %v55, %v112
    %v114 = vpop.f32.mrb[0].mxu0
    %v115 = vpop.f32.mrb[0].mxu0
    %v116 = vadd.f32 %v55, %v115
    %v117 = vpop.f32.mrb[0].mxu0
    %118 = vdwg.mxu0
    %v119 = vpack.c.bf16 %v116, %v113
    %v121 = vunpack.c.l.b16 %v119
    %v122 = vunpack.c.h.b16 %v119
    %v123 = vpack.c.b16 %v121, %v121
    %v124 = vpack.c.b16 %v122, %v122
    %127 = vst [vmem:[#allocation7] sm:$0xf] %v123
    %128 = vst [vmem:[#allocation7 + $0x4] sm:$0x7] %v124
    // Predicated region
    $region22: #{tpu_custom_call.1} parent=1 // pred_check
      _
    $region23: #{tpu_custom_call.1} parent=1 // pred_check_branch
      %130 = sbr.rel (0) target = $region25
    $region24: #{tpu_custom_call.1} parent=1 // pred_region
      %s132 = ssub.s32 128, 128
      %133 = vsyncadd [#allocation4], %s132
      %s134 = sshll.u32 [#allocation7], 4
      %s135 = int_to_ptr.vmem [resolvable:$true] %s134
      %140 = dma.vmem_to_hbm [thread:$0]  %s135, 128, %s3, [#allocation4], 64, 64, 4
    $region25: #{tpu_custom_call.1} parent=1 // pred_fallthru
      _
    // Predicated region
    $region26: #{tpu_custom_call.1} parent=1 // pred_check
      _
    $region27: #{tpu_custom_call.1} parent=1 // pred_check_branch
      %142 = sbr.rel (0) target = $region29
    $region28: #{tpu_custom_call.1} parent=1 // pred_region
      %143 = dma.done [#allocation4], 128
    $region29: #{tpu_custom_call.1} parent=1 // pred_fallthru
      _
    %144 = vsyncpa [#allocation3], 1
    %145 = vsyncpa [#allocation6], 1
    %146 = vsyncpa [#allocation4], 1

</llo_original>
